<compile_context>
chip_gen: v6e
topology: v6e:2x2x1
jax: 0.10.0
libtpu: 0.0.40
codegen_flags: <defaults>
</compile_context>

<pallas_src>
import functools

import jax
import jax.numpy as jnp
from jax.experimental import pallas as pl
from jax.experimental.pallas import tpu as pltpu


# Per-step VMEM at the largest tiles used here (tm=512, tk=1024) stays well
# under 32 MiB even double-buffered, so one limit is safe on every generation
# (v5e/v6e: 128 MiB physical, v7x: 64 MiB physical).
_VMEM_LIMIT_BYTES = 32 * 1024 * 1024


def _round_up(v, m):
    return ((v + m - 1) // m) * m


def _pick_k_tile(n_pad):
    """Reduction tile: largest multiple of 128 <= 1024 that divides n_pad."""
    m = n_pad // 128
    for q in (8, 7, 6, 5, 4, 3, 2, 1):
        if m % q == 0:
            return 128 * q
    return 128


def _pick_row_tile(n_pad):
    """Output-row tile: <=512, divides n_pad, >=2 row blocks, preferring an even
    block count so v7x's two TensorCores split the 'parallel' axis evenly."""
    if n_pad <= 128:
        return n_pad
    cands = [t for t in (512, 384, 256, 128) if n_pad % t == 0 and n_pad // t >= 2]
    if not cands:
        return n_pad
    even = [t for t in cands if (n_pad // t) % 2 == 0]
    return even[0] if even else cands[0]


def _pick_padding_and_tiles(n):
    n_pad = _round_up(n, 128)
    tm, tk = _pick_row_tile(n_pad), _pick_k_tile(n_pad)
    # Awkward N_pad (prime-ish multiple of 128) on a big graph: trade <=512
    # extra zero rows/cols for 4-8x bigger reduction tiles (DMA efficiency).
    if tk < 512 and n >= 4096:
        n_pad2 = _round_up(n, 512)
        tm2, tk2 = _pick_row_tile(n_pad2), _pick_k_tile(n_pad2)
        if tk2 > tk:
            return n_pad2, tm2, tk2
    return n_pad, tm, tk


# ---------------------------------------------------------------------------
# fc1 kernel: h0 = x @ W^T (computed once, stored bf16)
# ---------------------------------------------------------------------------
def _fc1_kernel(x_ref, wt_ref, h0_ref):
    h0_ref[...] = jnp.dot(x_ref[...], wt_ref[...],
                          preferred_element_type=jnp.float32).astype(h0_ref.dtype)


def _fc1_call(x_p, wt_p, hp, tm):
    n_pad, f = x_p.shape
    flops = 2 * n_pad * f * hp
    bytes_accessed = n_pad * f * 2 + f * hp * 2 + n_pad * hp * 2
    return pl.pallas_call(
        _fc1_kernel,
        out_shape=jax.ShapeDtypeStruct((n_pad, hp), jnp.bfloat16),
        grid=(n_pad // tm,),
        in_specs=[
            pl.BlockSpec((tm, f), lambda i: (i, 0)),      # x rows of this tile
            pl.BlockSpec((f, hp), lambda i: (0, 0)),      # W^T (padded), resident
        ],
        out_specs=pl.BlockSpec((tm, hp), lambda i: (i, 0)),
        compiler_params=pltpu.CompilerParams(
            dimension_semantics=("parallel",),
            vmem_limit_bytes=_VMEM_LIMIT_BYTES),
        cost_estimate=pl.CostEstimate(flops=int(flops), transcendentals=0,
                                      bytes_accessed=int(bytes_accessed)),
    )(x_p, wt_p)


# ---------------------------------------------------------------------------
# Fused first layer: out[:, 0:Hp]      = h0
#                    out[:, Hp:2Hp]   += adj1 @ h0
#                    out[:, 2Hp:3Hp]  += adj2 @ h0
# grid = (row blocks, reduction blocks over N); output block resident across k.
# ---------------------------------------------------------------------------
def _h2gcn_fused_kernel(h0r_ref, h0k_ref, a1_ref, a2_ref, o_ref, *, hp):
    k = pl.program_id(1)

    @pl.when(k == 0)
    def _():
        o_ref[:, 0:hp] = h0r_ref[...].astype(o_ref.dtype)
        o_ref[:, hp:3 * hp] = jnp.zeros((o_ref.shape[0], 2 * hp), o_ref.dtype)

    h0_k = h0k_ref[...]
    o_ref[:, hp:2 * hp] += jnp.dot(a1_ref[...], h0_k,
                                   preferred_element_type=jnp.float32)
    o_ref[:, 2 * hp:3 * hp] += jnp.dot(a2_ref[...], h0_k,
                                       preferred_element_type=jnp.float32)


def _fused_first_layer(h0_p, a1_p, a2_p, hp, tm, tk):
    n_pad = h0_p.shape[0]
    grid = (n_pad // tm, n_pad // tk)
    flops = 2 * 2 * n_pad * n_pad * hp
    bytes_accessed = (2 * n_pad * n_pad * 2          # adj1 + adj2 (bf16)
                      + grid[0] * n_pad * hp * 2     # h0_k re-read per row block
                      + n_pad * hp * 2               # h0 row tiles (once per i)
                      + n_pad * 3 * hp * 4)          # output writeback (f32)
    return pl.pallas_call(
        functools.partial(_h2gcn_fused_kernel, hp=hp),
        out_shape=jax.ShapeDtypeStruct((n_pad, 3 * hp), jnp.float32),
        grid=grid,
        in_specs=[
            pl.BlockSpec((tm, hp), lambda i, k: (i, 0)),   # h0 rows of this tile
            pl.BlockSpec((tk, hp), lambda i, k: (k, 0)),   # h0 rows of k block
            pl.BlockSpec((tm, tk), lambda i, k: (i, k)),   # adj1 tile
            pl.BlockSpec((tm, tk), lambda i, k: (i, k)),   # adj2 tile
        ],
        out_specs=pl.BlockSpec((tm, 3 * hp), lambda i, k: (i, 0)),
        compiler_params=pltpu.CompilerParams(
            dimension_semantics=("parallel", "arbitrary"),
            vmem_limit_bytes=_VMEM_LIMIT_BYTES),
        cost_estimate=pl.CostEstimate(flops=int(flops), transcendentals=0,
                                      bytes_accessed=int(bytes_accessed)),
    )(h0_p, h0_p, a1_p, a2_p)


# ---------------------------------------------------------------------------
# Extra-layer kernel (num_layers > 1): out = [adj1 @ h | adj2 @ h]
# ---------------------------------------------------------------------------
def _adj_pair_kernel(h_ref, a1_ref, a2_ref, o_ref, *, hp):
    k = pl.program_id(1)

    @pl.when(k == 0)
    def _():
        o_ref[...] = jnp.zeros_like(o_ref)

    hk = h_ref[...]
    o_ref[:, 0:hp] += jnp.dot(a1_ref[...], hk, preferred_element_type=jnp.float32)
    o_ref[:, hp:2 * hp] += jnp.dot(a2_ref[...], hk, preferred_element_type=jnp.float32)


def _adj_pair_call(h_p, a1_p, a2_p, hp, tm, tk):
    n_pad = h_p.shape[0]
    grid = (n_pad // tm, n_pad // tk)
    flops = 2 * 2 * n_pad * n_pad * hp
    bytes_accessed = (2 * n_pad * n_pad * 2
                      + grid[0] * n_pad * hp * 2
                      + n_pad * 2 * hp * 4)
    return pl.pallas_call(
        functools.partial(_adj_pair_kernel, hp=hp),
        out_shape=jax.ShapeDtypeStruct((n_pad, 2 * hp), jnp.float32),
        grid=grid,
        in_specs=[
            pl.BlockSpec((tk, hp), lambda i, k: (k, 0)),
            pl.BlockSpec((tm, tk), lambda i, k: (i, k)),
            pl.BlockSpec((tm, tk), lambda i, k: (i, k)),
        ],
        out_specs=pl.BlockSpec((tm, 2 * hp), lambda i, k: (i, 0)),
        compiler_params=pltpu.CompilerParams(
            dimension_semantics=("parallel", "arbitrary"),
            vmem_limit_bytes=_VMEM_LIMIT_BYTES),
        cost_estimate=pl.CostEstimate(flops=int(flops), transcendentals=0,
                                      bytes_accessed=int(bytes_accessed)),
    )(h_p, a1_p, a2_p)


# ---------------------------------------------------------------------------
# Host-side helpers + H2GCNBranch forward
# ---------------------------------------------------------------------------
def prepare_adjacency(adj1, adj2, dtype=jnp.bfloat16):
    """Pad + cast the dense adjacencies once; cache the result and pass it to
    h2gcn_branch_forward(..., prepared_adj=...) across repeated calls."""
    n = adj1.shape[0]
    n_pad, _, _ = _pick_padding_and_tiles(n)
    a1_p = jnp.pad(adj1, ((0, n_pad - n), (0, n_pad - n))).astype(dtype)
    a2_p = jnp.pad(adj2, ((0, n_pad - n), (0, n_pad - n))).astype(dtype)
    return a1_p, a2_p


def h2gcn_branch_forward(x, adj1, adj2, w_fc1, num_layers=1, prepared_adj=None):
    """x: [N, in_dim], adj1/adj2: [N, N] dense, w_fc1: [hidden, in_dim]
    (PyTorch nn.Linear layout). Returns [N, (2*num_layers+1)*hidden] float32."""
    N, _ = x.shape
    H = w_fc1.shape[0]
    Hp = _round_up(H, 128)              # lane-dense output columns
    N_pad, tm, tk = _pick_padding_and_tiles(N)

    cdt = jnp.bfloat16
    # Zero padding is exact: padded x rows -> h0 rows = 0; padded adjacency
    # rows/cols are 0 -> no contribution to the real block.
    x_p = jnp.pad(x, ((0, N_pad - N), (0, 0))).astype(cdt)
    wt_p = jnp.pad(w_fc1.T, ((0, 0), (0, Hp - H))).astype(cdt)
    if prepared_adj is None:
        prepared_adj = prepare_adjacency(adj1, adj2, dtype=cdt)
    a1_p, a2_p = prepared_adj

    # h0 = x @ W^T, computed once (bf16 storage, f32 MXU accumulation).
    h0_p = _fc1_call(x_p, wt_p, Hp, tm)                       # [N_pad, Hp]

    out3 = _fused_first_layer(h0_p, a1_p, a2_p, Hp, tm, tk)   # [N_pad, 3*Hp]

    outputs = [out3[:N, 0:H], out3[:N, Hp:Hp + H], out3[:N, 2 * Hp:2 * Hp + H]]
    h_prev_pad = out3[:, Hp:2 * Hp]     # h1 (padded rows stay zero)

    for _ in range(num_layers - 1):
        out_pair = _adj_pair_call(h_prev_pad.astype(cdt), a1_p, a2_p, Hp, tm, tk)
        outputs.append(out_pair[:N, 0:H])
        outputs.append(out_pair[:N, Hp:Hp + H])
        h_prev_pad = out_pair[:, 0:Hp]

    if num_layers == 1 and Hp == H:
        h = out3[:N]                    # already [h0 | h1 | h2], no extra copy
    else:
        h = jnp.concatenate(outputs, axis=1)
    # nn.Dropout is identity in eval mode (inference semantics).
    # TODO(synk): training-mode dropout via pltpu.prng_random_bits if needed.
    return h


if __name__ == "__main__":
    # Small synthetic shapes: 16 nodes, in_dim=8, hidden_dim=32, num_layers=1.
    N, IN_DIM, HIDDEN, NUM_LAYERS = 16, 8, 32, 1

    key = jax.random.PRNGKey(0)
    k_x, k_w, k_a1, k_a2 = jax.random.split(key, 4)

    x = jax.random.normal(k_x, (N, IN_DIM), dtype=jnp.float32)
    w_fc1 = jax.random.normal(k_w, (HIDDEN, IN_DIM), dtype=jnp.float32) * 0.1
    a1 = (jax.random.uniform(k_a1, (N, N)) > 0.7).astype(jnp.float32)
    a2 = (jax.random.uniform(k_a2, (N, N)) > 0.7).astype(jnp.float32)
    adj1 = a1 / jnp.maximum(a1.sum(axis=1, keepdims=True), 1.0)
    adj2 = a2 / jnp.maximum(a2.sum(axis=1, keepdims=True), 1.0)

    # Hoisted pad + bf16 cast of the adjacencies, reused across calls below.
    prep = jax.tree_util.tree_map(jax.block_until_ready,
                                  prepare_adjacency(adj1, adj2))

    out = h2gcn_branch_forward(x, adj1, adj2, w_fc1, num_layers=NUM_LAYERS,
                               prepared_adj=prep)
    out = jax.block_until_ready(out)

    # Plain-JAX f32 reference (kernel computes in bf16 with f32 accumulation,
    # so tolerance is loosened accordingly).
    def ref_forward(x, adj1, adj2, w, layers):
        h0 = x @ w.T
        outs = [h0]
        hp_ = h0
        for _ in range(layers):
            h1 = adj1 @ hp_
            h2 = adj2 @ hp_
            outs += [h1, h2]
            hp_ = h1
        return jnp.concatenate(outs, axis=1)

    ref = ref_forward(x, adj1, adj2, w_fc1, NUM_LAYERS)
    assert out.shape == (N, (2 * NUM_LAYERS + 1) * HIDDEN), out.shape
    assert jnp.allclose(out, ref, atol=3e-2, rtol=3e-2), float(
        jnp.max(jnp.abs(out - ref)))

    # Also exercise the extra-layer (adjacency-pair) kernel path, reusing the
    # prepared (padded bf16) adjacencies.
    out2 = jax.block_until_ready(
        h2gcn_branch_forward(x, adj1, adj2, w_fc1, num_layers=2,
                             prepared_adj=prep))
    ref2 = ref_forward(x, adj1, adj2, w_fc1, 2)
    assert out2.shape == (N, 5 * HIDDEN), out2.shape
    assert jnp.allclose(out2, ref2, atol=3e-2, rtol=3e-2), float(
        jnp.max(jnp.abs(out2 - ref2)))

    print("KERNEL_OK")
</pallas_src>

<mosaic_0001>
module attributes {stable_mosaic.version = 11 : i64} {
  func.func @_fc1_kernel(%arg0: i32, %arg1: memref<128x8xbf16, #tpu.memory_space<vmem>>, %arg2: memref<8x128xbf16, #tpu.memory_space<vmem>>, %arg3: memref<128x128xbf16, #tpu.memory_space<vmem>>) attributes {dimension_semantics = [#tpu.dimension_semantics<parallel>], iteration_bounds = array<i64: 1>, scalar_prefetch = 0 : i64, scratch_operands = 0 : i64, tpu.core_type = #tpu.core_type<tc>, window_params = [{transform_indices = @transform_0, window_bounds = array<i64: 128, 8>}, {pipeline_mode = #tpu.pipeline_mode<synchronous>, transform_indices = @transform_1, window_bounds = array<i64: 8, 128>}, {transform_indices = @transform_2, window_bounds = array<i64: 128, 128>}]} {
    %c0 = arith.constant 0 : index
    %c0_0 = arith.constant 0 : index
    %0 = vector.load %arg1[%c0, %c0_0] : memref<128x8xbf16, #tpu.memory_space<vmem>>, vector<128x8xbf16>
    %c0_1 = arith.constant 0 : index
    %c0_2 = arith.constant 0 : index
    %1 = vector.load %arg2[%c0_1, %c0_2] : memref<8x128xbf16, #tpu.memory_space<vmem>>, vector<8x128xbf16>
    %cst = arith.constant dense<0.000000e+00> : vector<128x128xf32>
    %2 = tpu.matmul %0, %1, %cst {dimension_numbers = #tpu.dot_dimension_numbers<[1], [0], [0], [1], [0, 0, 1, 1], [], []>} : vector<128x8xbf16>, vector<8x128xbf16>, vector<128x128xf32> -> vector<128x128xf32>
    %3 = arith.truncf %2 : vector<128x128xf32> to vector<128x128xbf16>
    %c0_3 = arith.constant 0 : index
    %c0_4 = arith.constant 0 : index
    %4 = vector.load %arg3[%c0_3, %c0_4] : memref<128x128xbf16, #tpu.memory_space<vmem>>, vector<128x128xbf16>
    tpu.vector_store %arg3[%c0_3, %c0_4], %3 {strides = array<i32>} : memref<128x128xbf16, #tpu.memory_space<vmem>>, vector<128x128xbf16>,
    return
  }
  func.func @transform_0(%arg0: i32) -> (i32, i32) {
    %c0_i32 = arith.constant 0 : i32
    %c0_i32_0 = arith.constant 0 : i32
    return %arg0, %c0_i32 : i32, i32
  }
  func.func @transform_1(%arg0: i32) -> (i32, i32) {
    %c0_i32 = arith.constant 0 : i32
    %c0_i32_0 = arith.constant 0 : i32
    %c0_i32_1 = arith.constant 0 : i32
    return %c0_i32, %c0_i32_0 : i32, i32
  }
  func.func @transform_2(%arg0: i32) -> (i32, i32) {
    %c0_i32 = arith.constant 0 : i32
    %c0_i32_0 = arith.constant 0 : i32
    return %arg0, %c0_i32 : i32, i32
  }
}

</mosaic_0001>

<llo_original>
// kernel: tpu_custom_call.1
$region0: #{tpu_custom_call.1}
  #allocation0 [shape = 'u32[]', space=smem, size = 0x4, offset = 0x4, fixed_abs, tag = 'smem constant byte address 0x4 - core index']
  #allocation1 [shape = 'u32[144,128]{1,0:T(1,128)}', space=vmem, size = 0x12000, scoped, tag = 'internal scratch']
  %s0 = inlined_call_operand.vmem [shape: bf16[128,8], index: 0, kind: input, shape index: {}]
  %s1 = inlined_call_operand.vmem [shape: bf16[8,128], index: 1, kind: input, shape index: {}]
  %s2 = inlined_call_operand.hbm [shape: bf16[128,128], index: 2, kind: output, shape index: {}]
  %s3 = sld [smem:[#allocation0]]
  $region18: #{tpu_custom_call.1} parent=0
    _
  %s5 = ssub.s32 1, %s3
  %s6 = scalar_select 0, %s5, %s3
  $region1: #{tpu_custom_call.1} parent=0
    #allocation2 [shape = 'u8[32768]{0}', space=vmem, size = 0x8000, scoped, tag = 'output window, operand 0, single buffered']
    #allocation3 [shape = 's32[1]{0}', space=sflag, size = 0x4, scoped, tag = 'scoped memory for tpu_custom_call.1']
    %7 = vsyncpa [#allocation3], 0
    // Predicated region
    $region2: #{tpu_custom_call.1} parent=1 // pred_check
      _
    $region3: #{tpu_custom_call.1} parent=1 // pred_check_branch
      %9 = sbr.rel (0) target = $region5
    $region4: #{tpu_custom_call.1} parent=1 // pred_region
      _
    $region5: #{tpu_custom_call.1} parent=1 // pred_fallthru
      _
    // Predicated region
    $region6: #{tpu_custom_call.1} parent=1 // pred_check
      _
    $region7: #{tpu_custom_call.1} parent=1 // pred_check_branch
      %11 = sbr.rel (0) target = $region9
    $region8: #{tpu_custom_call.1} parent=1 // pred_region
      _
    $region9: #{tpu_custom_call.1} parent=1 // pred_fallthru
      _
    %v13 = vld [vmem:[%s0] sm:$0xf]
    %v14 = vld [vmem:[%s0 + $0x4] sm:$0xf]
    %v15 = vld [vmem:[%s0 + $0x8] sm:$0xf]
    %v16 = vld [vmem:[%s0 + $0xc] sm:$0xf]
    %v17 = vld [vmem:[%s0 + $0x10] sm:$0xf]
    %v18 = vld [vmem:[%s0 + $0x14] sm:$0xf]
    %v19 = vld [vmem:[%s0 + $0x18] sm:$0xf]
    %v20 = vld [vmem:[%s0 + $0x1c] sm:$0xf]
    %v21 = vld [vmem:[%s0 + $0x20] sm:$0xf]
    %v22 = vld [vmem:[%s0 + $0x24] sm:$0xf]
    %v23 = vld [vmem:[%s0 + $0x28] sm:$0xf]
    %v24 = vld [vmem:[%s0 + $0x2c] sm:$0xf]
    %v25 = vld [vmem:[%s0 + $0x30] sm:$0xf]
    %v26 = vld [vmem:[%s0 + $0x34] sm:$0xf]
    %v27 = vld [vmem:[%s0 + $0x38] sm:$0xf]
    %v28 = vld [vmem:[%s0 + $0x3c] sm:$0xf]
    %v29 = vld [vmem:[%s1] sm:$0xf]
    %v46 = vunpack.c.l.b16 %v13
    %v47 = vunpack.c.l.b16 %v14
    %v48 = vunpack.c.l.b16 %v15
    %v49 = vunpack.c.l.b16 %v16
    %v50 = vunpack.c.l.b16 %v17
    %v51 = vunpack.c.l.b16 %v18
    %v52 = vunpack.c.l.b16 %v19
    %v53 = vunpack.c.l.b16 %v20
    %v54 = vunpack.c.l.b16 %v21
    %v55 = vunpack.c.l.b16 %v22
    %v56 = vunpack.c.l.b16 %v23
    %v57 = vunpack.c.l.b16 %v24
    %v58 = vunpack.c.l.b16 %v25
    %v59 = vunpack.c.l.b16 %v26
    %v60 = vunpack.c.l.b16 %v27
    %v61 = vunpack.c.l.b16 %v28
    %v62 = vpack.c.b16 %v47, %v46
    %v63 = vpack.c.b16 %v49, %v48
    %v64 = vpack.c.b16 %v51, %v50
    %v65 = vpack.c.b16 %v53, %v52
    %v66 = vpack.c.b16 %v55, %v54
    %v67 = vpack.c.b16 %v57, %v56
    %v68 = vpack.c.b16 %v59, %v58
    %v69 = vpack.c.b16 %v61, %v60
    %vm70 = vcmask 64512
    %v72 = vsel %vm70, %v62, 0
    %v75 = vsel %vm70, %v63, 0
    %v78 = vsel %vm70, %v64, 0
    %v81 = vsel %vm70, %v65, 0
    %v84 = vsel %vm70, %v66, 0
    %v87 = vsel %vm70, %v67, 0
    %v90 = vsel %vm70, %v68, 0
    %v93 = vsel %vm70, %v69, 0
    %vm95 = vcmask 1043456
    %v97 = vsel %vm95, %v29, 0
    %99 = vmatprep.subr.bf16.mxu0 0
    %100 = vmatpush1.bf16.msra.mxu0 0
    %101 = vmatprep.subr.bf16.mxu0 0
    %102 = vmatpush1.bf16.msra.mxu0 0
    %103 = vmatprep.subr.bf16.mxu0 0
    %104 = vmatpush1.bf16.msra.mxu0 0
    %105 = vmatprep.subr.bf16.mxu0 0
    %106 = vmatpush1.bf16.msra.mxu0 0
    %107 = vmatprep.subr.bf16.mxu0 0
    %108 = vmatpush1.bf16.msra.mxu0 0
    %109 = vmatprep.subr.bf16.mxu0 0
    %110 = vmatpush1.bf16.msra.mxu0 0
    %111 = vmatprep.subr.bf16.mxu0 0
    %112 = vmatpush1.bf16.msra.mxu0 0
    %113 = vmatprep.subr.bf16.mxu0 0
    %114 = vmatpush1.bf16.msra.mxu0 %v97
    %115 = vmatprep.subr.bf16.mxu0 0
    %116 = vmatpush2.bf16.msra.mxu0 0
    %117 = vmatprep.subr.bf16.mxu0 0
    %118 = vmatpush2.bf16.msra.mxu0 0
    %119 = vmatprep.subr.bf16.mxu0 0
    %120 = vmatpush2.bf16.msra.mxu0 0
    %121 = vmatprep.subr.bf16.mxu0 0
    %122 = vmatpush2.bf16.msra.mxu0 0
    %123 = vmatprep.subr.bf16.mxu0 0
    %124 = vmatpush2.bf16.msra.mxu0 0
    %125 = vmatprep.subr.bf16.mxu0 0
    %126 = vmatpush2.bf16.msra.mxu0 0
    %127 = vmatprep.subr.bf16.mxu0 0
    %128 = vmatpush2.bf16.msra.mxu0 0
    %129 = vmatprep.subr.bf16.mxu0 0
    %130 = vmatpush2.bf16.msra.mxu0 0
    %131 = vmatprep.mubr.bf16.mxu0 0
    %132 = vmatmul.mubr.bf16.gmra.mxu0 %v72
    %v133 = vpop.f32.mrf.mxu0
    %v134 = vadd.f32 0.0, %v133
    %v135 = vpop.f32.mrf.mxu0
    %v136 = vpop.f32.mrf.mxu0
    %v137 = vadd.f32 0.0, %v136
    %v138 = vpop.f32.mrf.mxu0
    %139 = vmatprep.mubr.bf16.mxu0 0
    %140 = vmatmul.mubr.bf16.gmra.mxu0 %v75
    %v141 = vpop.f32.mrf.mxu0
    %v142 = vadd.f32 0.0, %v141
    %v143 = vpop.f32.mrf.mxu0
    %v144 = vpop.f32.mrf.mxu0
    %v145 = vadd.f32 0.0, %v144
    %v146 = vpop.f32.mrf.mxu0
    %147 = vmatprep.mubr.bf16.mxu0 0
    %148 = vmatmul.mubr.bf16.gmra.mxu0 %v78
    %v149 = vpop.f32.mrf.mxu0
    %v150 = vadd.f32 0.0, %v149
    %v151 = vpop.f32.mrf.mxu0
    %v152 = vpop.f32.mrf.mxu0
    %v153 = vadd.f32 0.0, %v152
    %v154 = vpop.f32.mrf.mxu0
    %155 = vmatprep.mubr.bf16.mxu0 0
    %156 = vmatmul.mubr.bf16.gmra.mxu0 %v81
    %v157 = vpop.f32.mrf.mxu0
    %v158 = vadd.f32 0.0, %v157
    %v159 = vpop.f32.mrf.mxu0
    %v160 = vpop.f32.mrf.mxu0
    %v161 = vadd.f32 0.0, %v160
    %v162 = vpop.f32.mrf.mxu0
    %163 = vmatprep.mubr.bf16.mxu0 0
    %164 = vmatmul.mubr.bf16.gmra.mxu0 %v84
    %v165 = vpop.f32.mrf.mxu0
    %v166 = vadd.f32 0.0, %v165
    %v167 = vpop.f32.mrf.mxu0
    %v168 = vpop.f32.mrf.mxu0
    %v169 = vadd.f32 0.0, %v168
    %v170 = vpop.f32.mrf.mxu0
    %171 = vmatprep.mubr.bf16.mxu0 0
    %172 = vmatmul.mubr.bf16.gmra.mxu0 %v87
    %v173 = vpop.f32.mrf.mxu0
    %v174 = vadd.f32 0.0, %v173
    %v175 = vpop.f32.mrf.mxu0
    %v176 = vpop.f32.mrf.mxu0
    %v177 = vadd.f32 0.0, %v176
    %v178 = vpop.f32.mrf.mxu0
    %179 = vmatprep.mubr.bf16.mxu0 0
    %180 = vmatmul.mubr.bf16.gmra.mxu0 %v90
    %v181 = vpop.f32.mrf.mxu0
    %v182 = vadd.f32 0.0, %v181
    %v183 = vpop.f32.mrf.mxu0
    %v184 = vpop.f32.mrf.mxu0
    %v185 = vadd.f32 0.0, %v184
    %v186 = vpop.f32.mrf.mxu0
    %187 = vmatprep.mubr.bf16.mxu0 0
    %188 = vmatmul.mubr.bf16.gmra.mxu0 %v93
    %v189 = vpop.f32.mrf.mxu0
    %v190 = vadd.f32 0.0, %v189
    %v191 = vpop.f32.mrf.mxu0
    %v192 = vpop.f32.mrf.mxu0
    %v193 = vadd.f32 0.0, %v192
    %v194 = vpop.f32.mrf.mxu0
    %195 = vdwg.mxu0
    %v196 = vpack.c.bf16 %v137, %v134
    %v197 = vpack.c.bf16 %v145, %v142
    %v198 = vpack.c.bf16 %v153, %v150
    %v199 = vpack.c.bf16 %v161, %v158
    %v200 = vpack.c.bf16 %v169, %v166
    %v201 = vpack.c.bf16 %v177, %v174
    %v202 = vpack.c.bf16 %v185, %v182
    %v203 = vpack.c.bf16 %v193, %v190
    %v212 = vunpack.c.l.b16 %v196
    %v213 = vunpack.c.h.b16 %v196
    %v214 = vunpack.c.l.b16 %v197
    %v215 = vunpack.c.h.b16 %v197
    %v216 = vunpack.c.l.b16 %v198
    %v217 = vunpack.c.h.b16 %v198
    %v218 = vunpack.c.l.b16 %v199
    %v219 = vunpack.c.h.b16 %v199
    %v220 = vunpack.c.l.b16 %v200
    %v221 = vunpack.c.h.b16 %v200
    %v222 = vunpack.c.l.b16 %v201
    %v223 = vunpack.c.h.b16 %v201
    %v224 = vunpack.c.l.b16 %v202
    %v225 = vunpack.c.h.b16 %v202
    %v226 = vunpack.c.l.b16 %v203
    %v227 = vunpack.c.h.b16 %v203
    %v228 = vpack.c.b16 %v212, %v212
    %v229 = vpack.c.b16 %v213, %v213
    %v230 = vpack.c.b16 %v214, %v214
    %v231 = vpack.c.b16 %v215, %v215
    %v232 = vpack.c.b16 %v216, %v216
    %v233 = vpack.c.b16 %v217, %v217
    %v234 = vpack.c.b16 %v218, %v218
    %v235 = vpack.c.b16 %v219, %v219
    %v236 = vpack.c.b16 %v220, %v220
    %v237 = vpack.c.b16 %v221, %v221
    %v238 = vpack.c.b16 %v222, %v222
    %v239 = vpack.c.b16 %v223, %v223
    %v240 = vpack.c.b16 %v224, %v224
    %v241 = vpack.c.b16 %v225, %v225
    %v242 = vpack.c.b16 %v226, %v226
    %v243 = vpack.c.b16 %v227, %v227
    %260 = vst [vmem:[#allocation2] sm:$0xf] %v228
    %261 = vst [vmem:[#allocation2 + $0x4] sm:$0xf] %v229
    %262 = vst [vmem:[#allocation2 + $0x8] sm:$0xf] %v230
    %263 = vst [vmem:[#allocation2 + $0xc] sm:$0xf] %v231
    %264 = vst [vmem:[#allocation2 + $0x10] sm:$0xf] %v232
    %265 = vst [vmem:[#allocation2 + $0x14] sm:$0xf] %v233
    %266 = vst [vmem:[#allocation2 + $0x18] sm:$0xf] %v234
    %267 = vst [vmem:[#allocation2 + $0x1c] sm:$0xf] %v235
    %268 = vst [vmem:[#allocation2 + $0x20] sm:$0xf] %v236
    %269 = vst [vmem:[#allocation2 + $0x24] sm:$0xf] %v237
    %270 = vst [vmem:[#allocation2 + $0x28] sm:$0xf] %v238
    %271 = vst [vmem:[#allocation2 + $0x2c] sm:$0xf] %v239
    %272 = vst [vmem:[#allocation2 + $0x30] sm:$0xf] %v240
    %273 = vst [vmem:[#allocation2 + $0x34] sm:$0xf] %v241
    %274 = vst [vmem:[#allocation2 + $0x38] sm:$0xf] %v242
    %275 = vst [vmem:[#allocation2 + $0x3c] sm:$0xf] %v243
    // Predicated region
    $region10: #{tpu_custom_call.1} parent=1 // pred_check
      _
    $region11: #{tpu_custom_call.1} parent=1 // pred_check_branch
      %277 = sbr.rel (0) target = $region13
    $region12: #{tpu_custom_call.1} parent=1 // pred_region
      %s279 = ssub.s32 1024, 1024
      %280 = vsyncadd [#allocation3], %s279
      %s281 = sshll.u32 [#allocation2], 4
      %s282 = int_to_ptr.vmem [resolvable:$true] %s281
      %287 = dma.vmem_to_hbm [thread:$0]  %s282, 1024, %s2, [#allocation3], 64, 64, 4
    $region13: #{tpu_custom_call.1} parent=1 // pred_fallthru
      _
    // Predicated region
    $region14: #{tpu_custom_call.1} parent=1 // pred_check
      _
    $region15: #{tpu_custom_call.1} parent=1 // pred_check_branch
      %289 = sbr.rel (0) target = $region17
    $region16: #{tpu_custom_call.1} parent=1 // pred_region
      %290 = dma.done [#allocation3], 1024
    $region17: #{tpu_custom_call.1} parent=1 // pred_fallthru
      _
    %291 = vsyncpa [#allocation3], 1

</llo_original>
